<compile_context>
chip_gen: v7x
topology: tpu7x:2x2x1
jax: 0.10.0
libtpu: 0.0.40
codegen_flags: <defaults>
</compile_context>

<pallas_src>
import functools

import jax
import jax.numpy as jnp
from jax.experimental import pallas as pl
from jax.experimental.pallas import tpu as pltpu


def _round_up(x, m):
    return ((x + m - 1) // m) * m


def _pick_tile(mp):
    # mp is always a multiple of 128; prefer bigger tiles when they divide mp.
    for tm in (512, 256, 128):
        if mp % tm == 0:
            return tm
    return mp


# ---------------------------------------------------------------------------
# Pallas kernel: attend(cascade_repr) against the padded memory, tiled over
# memory rows with an online softmax.
# ---------------------------------------------------------------------------
def _attend_kernel(mem_ptr_ref, x_ref, mem_ref, wq_ref, bq_ref, wkv_ref,
                   bv_ref, o_ref, m_sc, l_sc, acc_sc, *, attn_dim, tile_m):
    # mem_ptr_ref: SMEM (1,) int32 -- number of valid memory rows
    # x:   [B, C]    bf16      mem tile: [TM, C] bf16
    # wq:  [C, A]    bf16      bq:  [1, A]  f32
    # wkv: [C, A+C]  bf16      bv:  [1, C]  f32   (fused [Wk | Wv]; bk dropped)
    # scratch: m_sc [B,1] f32, l_sc [B,1] f32, acc_sc [B,C] f32
    t = pl.program_id(0)
    mem_ptr = mem_ptr_ref[0]

    @pl.when(t == 0)
    def _init():
        m_sc[...] = jnp.full_like(m_sc[...], -jnp.inf)
        l_sc[...] = jnp.zeros_like(l_sc[...])
        acc_sc[...] = jnp.zeros_like(acc_sc[...])

    # Skip memory tiles that are entirely past mem_ptr (fully masked).
    @pl.when(t * tile_m < mem_ptr)
    def _compute():
        x = x_ref[...]                       # [B, C]  bf16
        mem = mem_ref[...]                   # [TM, C] bf16

        # Query projection: bf16 MXU, f32 accumulation, f32 bias; explicit bf16
        # operand for the score matmul.
        q = jnp.dot(x, wq_ref[...], preferred_element_type=jnp.float32) + bq_ref[...]
        q = q.astype(jnp.bfloat16)           # [B, A]

        # Fused K|V projection of the memory tile (one MXU pass).  bk is
        # softmax-invariant and dropped; only the V half gets a bias.
        kv = jnp.dot(mem, wkv_ref[...], preferred_element_type=jnp.float32)  # [TM, A+C]
        k = kv[:, :attn_dim].astype(jnp.bfloat16)                            # [TM, A]
        v = (kv[:, attn_dim:] + bv_ref[...]).astype(jnp.bfloat16)            # [TM, C]

        # Scores: contract attn_dim of q with attn_dim of k (no materialized k.T).
        s = jax.lax.dot_general(
            q, k, dimension_numbers=(((1,), (1,)), ((), ())),
            preferred_element_type=jnp.float32)                              # [B, TM]

        # Mask padded / not-yet-written rows BEFORE the online-softmax max/exp.
        col = t * tile_m + jax.lax.broadcasted_iota(jnp.int32, s.shape, 1)
        s = jnp.where(col < mem_ptr, s, jnp.float32(-1e30))

        m_prev = m_sc[...]
        m_new = jnp.maximum(m_prev, jnp.max(s, axis=-1, keepdims=True))
        alpha = jnp.exp(m_prev - m_new)
        p = jnp.exp(s - m_new)

        l_sc[...] = alpha * l_sc[...] + jnp.sum(p, axis=-1, keepdims=True)
        acc_sc[...] = alpha * acc_sc[...] + jnp.dot(
            p.astype(jnp.bfloat16), v, preferred_element_type=jnp.float32)
        m_sc[...] = m_new

    @pl.when(t == pl.num_programs(0) - 1)
    def _finalize():
        # Exact divide (review parity concern); l > 0 is guaranteed by the
        # wrapper: forward() never attends against an empty memory.
        o_ref[...] = (acc_sc[...] / l_sc[...]).astype(o_ref.dtype)


@functools.partial(jax.jit, static_argnames=("attn_dim", "tile_m"))
def attend_pallas(mem_ptr, x, mem, wq, bq, wkv, bv, *, attn_dim, tile_m):
    B, C = x.shape
    Mp = mem.shape[0]
    A = attn_dim
    AC = wkv.shape[1]
    n_tiles = Mp // tile_m

    rep = lambda shape: pl.BlockSpec(shape, lambda t, p: (0, 0))

    return pl.pallas_call(
        functools.partial(_attend_kernel, attn_dim=A, tile_m=tile_m),
        out_shape=jax.ShapeDtypeStruct((B, C), jnp.float32),
        grid_spec=pltpu.PrefetchScalarGridSpec(
            num_scalar_prefetch=1,          # mem_ptr -> SMEM (gates tile skip)
            grid=(n_tiles,),
            in_specs=[
                rep((B, C)),                                     # x (bf16)
                pl.BlockSpec((tile_m, C), lambda t, p: (t, 0)),  # memory tile
                rep((C, A)),                                     # Wq
                rep((1, A)),                                     # bq
                rep((C, AC)),                                    # fused [Wk | Wv]
                rep((1, C)),                                     # bv
            ],
            out_specs=rep((B, C)),
            scratch_shapes=[
                pltpu.VMEM((B, 1), jnp.float32),   # running max  m
                pltpu.VMEM((B, 1), jnp.float32),   # running sum  l
                pltpu.VMEM((B, C), jnp.float32),   # running acc
            ],
        ),
        compiler_params=pltpu.CompilerParams(
            dimension_semantics=("arbitrary",)),
    )(mem_ptr, x, mem, wq, bq, wkv, bv)


# ---------------------------------------------------------------------------
# JAX/Python port of the ExternalMemory module (state handled outside kernel)
# ---------------------------------------------------------------------------
class ExternalMemoryJax:
    def __init__(self, cascade_dim, memory_size=50, attn_dim=128, key=None,
                 param_dtype=jnp.bfloat16):
        self.mem_ptr = 0
        self.memory_size = memory_size
        self.cascade_dim = cascade_dim
        self.attn_dim = attn_dim
        self.param_dtype = param_dtype
        self.memory = None
        self._logical_rows = memory_size
        self._capacity = _round_up(max(memory_size, 1), 128)

        if key is None:
            key = jax.random.PRNGKey(0)
        kq, kk, kv, kbq, kbk, kbv = jax.random.split(key, 6)
        bound = cascade_dim ** -0.5
        u = lambda k, shape: jax.random.uniform(k, shape, jnp.float32, -bound, bound)
        # Stored pre-transposed as [in, out] (vs. PyTorch's [out, in]).
        self.wq = u(kq, (cascade_dim, attn_dim)).astype(param_dtype)
        self.wk = u(kk, (cascade_dim, attn_dim)).astype(param_dtype)
        self.wv = u(kv, (cascade_dim, cascade_dim)).astype(param_dtype)
        self.bq = u(kbq, (1, attn_dim))                 # biases stay f32
        self.bk = u(kbk, (1, attn_dim))                 # kept for reference only
        self.bv = u(kbv, (1, cascade_dim))
        # Fused K|V projection: one MXU pass over the memory operand.
        # bk is intentionally NOT fused (softmax-invariant, dropped in kernel).
        self.wkv = jnp.concatenate([self.wk, self.wv], axis=1)

    # -- state management (plain JAX glue, mirrors the nn.Module) ------------
    def initialize_memory(self, cascade_repr):
        b = cascade_repr.shape[0]
        self._logical_rows = self.memory_size
        self._capacity = _round_up(max(self.memory_size, 1), 128)
        mem = jnp.zeros((self._capacity, self.cascade_dim), self.param_dtype)
        c = jax.lax.stop_gradient(cascade_repr).astype(self.param_dtype)
        self.memory = jax.lax.dynamic_update_slice(mem, c, (self.mem_ptr, 0))
        self.mem_ptr += b

    def attend(self, cascade_repr):
        mem_ptr = jnp.asarray([self.mem_ptr], dtype=jnp.int32)
        x = cascade_repr.astype(self.param_dtype)
        tile_m = _pick_tile(self._capacity)
        return attend_pallas(mem_ptr, x, self.memory,
                             self.wq, self.bq, self.wkv, self.bv,
                             attn_dim=self.attn_dim, tile_m=tile_m)

    def update_memory(self, cascade_repr):
        b = cascade_repr.shape[0]
        c = jax.lax.stop_gradient(cascade_repr).astype(self.param_dtype)
        if self.mem_ptr + b <= self.memory_size:
            self.memory = jax.lax.dynamic_update_slice(self.memory, c,
                                                       (self.mem_ptr, 0))
            self.mem_ptr += b
        else:
            # Faithful to the PyTorch original: this branch can grow the logical
            # memory past memory_size (quirk of the reference module).  The
            # padded capacity stays fixed (>=128) whenever the logical rows fit,
            # so the attend kernel remains shape-static (no recompile).
            start = self.mem_ptr + b - self.memory_size
            logical = self.memory[:self._logical_rows]
            new_logical = jnp.concatenate([logical[start:], c], axis=0)
            self._logical_rows = new_logical.shape[0]
            new_cap = max(self._capacity, _round_up(self._logical_rows, 128))
            buf = jnp.zeros((new_cap, self.cascade_dim), self.param_dtype)
            self.memory = jax.lax.dynamic_update_slice(buf, new_logical, (0, 0))
            self._capacity = new_cap
            self.mem_ptr = self.memory_size

    def reset_memory(self):
        self.memory = None
        self.mem_ptr = 0
        self._logical_rows = self.memory_size
        self._capacity = _round_up(max(self.memory_size, 1), 128)

    def forward(self, cascade_repr):
        if self.memory is None:
            self.initialize_memory(cascade_repr)
            return cascade_repr
        return self.attend(cascade_repr)


# ---------------------------------------------------------------------------
# Pure-JAX reference (mirrors the PyTorch attend()) for correctness checking
# ---------------------------------------------------------------------------
def attend_reference(x, memory, mem_ptr, wq, bq, wk, bk, wv, bv):
    xf = x.astype(jnp.bfloat16).astype(jnp.float32)     # same quantization as kernel
    mem = memory[:mem_ptr].astype(jnp.float32)
    q = xf @ wq.astype(jnp.float32) + bq
    k = mem @ wk.astype(jnp.float32) + bk
    v = mem @ wv.astype(jnp.float32) + bv
    p = jax.nn.softmax(q @ k.T, axis=-1)
    return p @ v


if __name__ == "__main__":
    B, C, A, MEM = 2, 32, 128, 50

    key = jax.random.PRNGKey(0)
    k_params, k1, k2, k3 = jax.random.split(key, 4)

    mod = ExternalMemoryJax(cascade_dim=C, memory_size=MEM, attn_dim=A, key=k_params)

    # First forward: memory is None -> initialize and pass input through.
    x1 = jax.random.normal(k1, (B, C), jnp.float32)
    out1 = jax.block_until_ready(mod.forward(x1))
    assert out1.shape == (B, C)

    # Second forward: attend against the padded memory via the Pallas kernel.
    x2 = jax.random.normal(k2, (B, C), jnp.float32)
    out2 = jax.block_until_ready(mod.forward(x2))
    assert out2.shape == (B, C)
    ref2 = attend_reference(x2, mod.memory, mod.mem_ptr,
                            mod.wq, mod.bq, mod.wk, mod.bk, mod.wv, mod.bv)
    assert jnp.allclose(out2, ref2, atol=1e-2, rtol=1e-2), "mismatch vs reference (step 2)"

    # Grow the memory and attend again: identical shapes -> same compiled kernel,
    # the in-kernel mem_ptr mask handles the larger valid region.
    mod.update_memory(x2)
    x3 = jax.random.normal(k3, (B, C), jnp.float32)
    out3 = jax.block_until_ready(mod.forward(x3))
    ref3 = attend_reference(x3, mod.memory, mod.mem_ptr,
                            mod.wq, mod.bq, mod.wk, mod.bk, mod.wv, mod.bv)
    assert jnp.allclose(out3, ref3, atol=1e-2, rtol=1e-2), "mismatch vs reference (step 3)"

    print("KERNEL_OK")
</pallas_src>

<mosaic_0001>
module attributes {stable_mosaic.version = 11 : i64} {
  func.func @_attend_kernel(%arg0: i32, %arg1: memref<1xi32, #tpu.memory_space<smem>>, %arg2: memref<2x32xbf16, #tpu.memory_space<vmem>>, %arg3: memref<128x32xbf16, #tpu.memory_space<vmem>>, %arg4: memref<32x128xbf16, #tpu.memory_space<vmem>>, %arg5: memref<1x128xf32, #tpu.memory_space<vmem>>, %arg6: memref<32x160xbf16, #tpu.memory_space<vmem>>, %arg7: memref<1x32xf32, #tpu.memory_space<vmem>>, %arg8: memref<2x32xf32, #tpu.memory_space<vmem>>, %arg9: memref<2x1xf32, #tpu.memory_space<vmem>>, %arg10: memref<2x1xf32, #tpu.memory_space<vmem>>, %arg11: memref<2x32xf32, #tpu.memory_space<vmem>>) attributes {dimension_semantics = [#tpu.dimension_semantics<arbitrary>], iteration_bounds = array<i64: 1>, scalar_prefetch = 1 : i64, scratch_operands = 3 : i64, tpu.core_type = #tpu.core_type<tc>, window_params = [{pipeline_mode = #tpu.pipeline_mode<synchronous>, transform_indices = @transform_0, window_bounds = array<i64: 2, 32>}, {transform_indices = @transform_1, window_bounds = array<i64: 128, 32>}, {pipeline_mode = #tpu.pipeline_mode<synchronous>, transform_indices = @transform_2, window_bounds = array<i64: 32, 128>}, {pipeline_mode = #tpu.pipeline_mode<synchronous>, transform_indices = @transform_3, window_bounds = array<i64: 1, 128>}, {pipeline_mode = #tpu.pipeline_mode<synchronous>, transform_indices = @transform_4, window_bounds = array<i64: 32, 160>}, {pipeline_mode = #tpu.pipeline_mode<synchronous>, transform_indices = @transform_5, window_bounds = array<i64: 1, 32>}, {pipeline_mode = #tpu.pipeline_mode<synchronous>, transform_indices = @transform_6, window_bounds = array<i64: 2, 32>}]} {
    %c0 = arith.constant 0 : index
    %0 = memref.load %arg1[%c0] : memref<1xi32, #tpu.memory_space<smem>>
    %c0_i32 = arith.constant 0 : i32
    %1 = arith.cmpi eq, %arg0, %c0_i32 : i32
    %2 = arith.extui %1 : i1 to i32
    %c0_i32_0 = arith.constant 0 : i32
    %3 = arith.cmpi ne, %2, %c0_i32_0 : i32
    scf.if %3 {
      %cst = arith.constant 0xFF800000 : f32
      %11 = vector.broadcast %cst : f32 to vector<2x1xf32>
      %c0_4 = arith.constant 0 : index
      %c0_5 = arith.constant 0 : index
      %12 = vector.load %arg9[%c0_4, %c0_5] : memref<2x1xf32, #tpu.memory_space<vmem>>, vector<2x1xf32>
      tpu.vector_store %arg9[%c0_4, %c0_5], %11 {strides = array<i32>} : memref<2x1xf32, #tpu.memory_space<vmem>>, vector<2x1xf32>,
      %cst_6 = arith.constant 0.000000e+00 : f32
      %13 = vector.broadcast %cst_6 : f32 to vector<2x1xf32>
      %c0_7 = arith.constant 0 : index
      %c0_8 = arith.constant 0 : index
      %14 = vector.load %arg10[%c0_7, %c0_8] : memref<2x1xf32, #tpu.memory_space<vmem>>, vector<2x1xf32>
      tpu.vector_store %arg10[%c0_7, %c0_8], %13 {strides = array<i32>} : memref<2x1xf32, #tpu.memory_space<vmem>>, vector<2x1xf32>,
      %cst_9 = arith.constant 0.000000e+00 : f32
      %15 = vector.broadcast %cst_9 : f32 to vector<2x32xf32>
      %c0_10 = arith.constant 0 : index
      %c0_11 = arith.constant 0 : index
      %16 = vector.load %arg11[%c0_10, %c0_11] : memref<2x32xf32, #tpu.memory_space<vmem>>, vector<2x32xf32>
      tpu.vector_store %arg11[%c0_10, %c0_11], %15 {strides = array<i32>} : memref<2x32xf32, #tpu.memory_space<vmem>>, vector<2x32xf32>,
    } else {
    }
    %c128_i32 = arith.constant 128 : i32
    %4 = arith.muli %arg0, %c128_i32 : i32
    %5 = arith.cmpi slt, %4, %0 : i32
    %6 = arith.extui %5 : i1 to i32
    %c0_i32_1 = arith.constant 0 : i32
    %7 = arith.cmpi ne, %6, %c0_i32_1 : i32
    scf.if %7 {
      %c0_4 = arith.constant 0 : index
      %c0_5 = arith.constant 0 : index
      %11 = vector.load %arg2[%c0_4, %c0_5] : memref<2x32xbf16, #tpu.memory_space<vmem>>, vector<2x32xbf16>
      %c0_6 = arith.constant 0 : index
      %c0_7 = arith.constant 0 : index
      %12 = vector.load %arg3[%c0_6, %c0_7] : memref<128x32xbf16, #tpu.memory_space<vmem>>, vector<128x32xbf16>
      %c0_8 = arith.constant 0 : index
      %c0_9 = arith.constant 0 : index
      %13 = vector.load %arg4[%c0_8, %c0_9] : memref<32x128xbf16, #tpu.memory_space<vmem>>, vector<32x128xbf16>
      %cst = arith.constant dense<0.000000e+00> : vector<2x128xf32>
      %14 = tpu.matmul %11, %13, %cst {dimension_numbers = #tpu.dot_dimension_numbers<[1], [0], [0], [1], [0, 0, 1, 1], [], []>} : vector<2x32xbf16>, vector<32x128xbf16>, vector<2x128xf32> -> vector<2x128xf32>
      %c0_10 = arith.constant 0 : index
      %c0_11 = arith.constant 0 : index
      %15 = vector.load %arg5[%c0_10, %c0_11] : memref<1x128xf32, #tpu.memory_space<vmem>>, vector<1x128xf32>
      %16 = vector.broadcast %15 : vector<1x128xf32> to vector<2x128xf32>
      %17 = arith.addf %14, %16 : vector<2x128xf32>
      %18 = arith.truncf %17 : vector<2x128xf32> to vector<2x128xbf16>
      %c0_12 = arith.constant 0 : index
      %c0_13 = arith.constant 0 : index
      %19 = vector.load %arg6[%c0_12, %c0_13] : memref<32x160xbf16, #tpu.memory_space<vmem>>, vector<32x160xbf16>
      %cst_14 = arith.constant dense<0.000000e+00> : vector<128x160xf32>
      %20 = tpu.matmul %12, %19, %cst_14 {dimension_numbers = #tpu.dot_dimension_numbers<[1], [0], [0], [1], [0, 0, 1, 1], [], []>} : vector<128x32xbf16>, vector<32x160xbf16>, vector<128x160xf32> -> vector<128x160xf32>
      %21 = vector.extract_strided_slice %20 {offsets = [0, 0], sizes = [128, 128], strides = [1, 1]} : vector<128x160xf32> to vector<128x128xf32>
      %22 = arith.truncf %21 : vector<128x128xf32> to vector<128x128xbf16>
      %23 = vector.extract_strided_slice %20 {offsets = [0, 128], sizes = [128, 32], strides = [1, 1]} : vector<128x160xf32> to vector<128x32xf32>
      %c0_15 = arith.constant 0 : index
      %c0_16 = arith.constant 0 : index
      %24 = vector.load %arg7[%c0_15, %c0_16] : memref<1x32xf32, #tpu.memory_space<vmem>>, vector<1x32xf32>
      %25 = vector.broadcast %24 : vector<1x32xf32> to vector<128x32xf32>
      %26 = arith.addf %23, %25 : vector<128x32xf32>
      %27 = arith.truncf %26 : vector<128x32xf32> to vector<128x32xbf16>
      %cst_17 = arith.constant dense<0.000000e+00> : vector<2x128xf32>
      %28 = tpu.matmul %18, %22, %cst_17 {dimension_numbers = #tpu.dot_dimension_numbers<[1], [1], [0], [0], [0, 0, 1, 0], [], []>} : vector<2x128xbf16>, vector<128x128xbf16>, vector<2x128xf32> -> vector<2x128xf32>
      %c128_i32_18 = arith.constant 128 : i32
      %29 = arith.muli %arg0, %c128_i32_18 : i32
      %30 = tpu.iota {dimensions = array<i32: 1>} : vector<2x128xi32>
      %31 = vector.broadcast %29 : i32 to vector<2x128xi32>
      %32 = arith.addi %31, %30 : vector<2x128xi32>
      %33 = vector.broadcast %0 : i32 to vector<2x128xi32>
      %34 = arith.cmpi slt, %32, %33 : vector<2x128xi32>
      %cst_19 = arith.constant -1.000000e+30 : f32
      %35 = vector.broadcast %cst_19 : f32 to vector<2x128xf32>
      %36 = arith.select %34, %28, %35 : vector<2x128xi1>, vector<2x128xf32>
      %c0_20 = arith.constant 0 : index
      %c0_21 = arith.constant 0 : index
      %37 = vector.load %arg9[%c0_20, %c0_21] : memref<2x1xf32, #tpu.memory_space<vmem>>, vector<2x1xf32>
      %cst_22 = arith.constant dense<0xFF800000> : vector<2xf32>
      %38 = vector.multi_reduction <maximumf>, %36, %cst_22 [1] : vector<2x128xf32> to vector<2xf32>
      %39 = vector.shape_cast %38 : vector<2xf32> to vector<2x1xf32>
      %40 = arith.maximumf %37, %39 : vector<2x1xf32>
      %41 = arith.subf %37, %40 : vector<2x1xf32>
      %42 = math.exp %41 : vector<2x1xf32>
      %43 = vector.broadcast %40 : vector<2x1xf32> to vector<2x128xf32>
      %44 = arith.subf %36, %43 : vector<2x128xf32>
      %45 = math.exp %44 : vector<2x128xf32>
      %c0_23 = arith.constant 0 : index
      %c0_24 = arith.constant 0 : index
      %46 = vector.load %arg10[%c0_23, %c0_24] : memref<2x1xf32, #tpu.memory_space<vmem>>, vector<2x1xf32>
      %47 = arith.mulf %42, %46 : vector<2x1xf32>
      %cst_25 = arith.constant dense<0.000000e+00> : vector<2xf32>
      %48 = vector.multi_reduction <add>, %45, %cst_25 [1] : vector<2x128xf32> to vector<2xf32>
      %49 = vector.shape_cast %48 : vector<2xf32> to vector<2x1xf32>
      %50 = arith.addf %47, %49 : vector<2x1xf32>
      %c0_26 = arith.constant 0 : index
      %c0_27 = arith.constant 0 : index
      %51 = vector.load %arg10[%c0_26, %c0_27] : memref<2x1xf32, #tpu.memory_space<vmem>>, vector<2x1xf32>
      tpu.vector_store %arg10[%c0_26, %c0_27], %50 {strides = array<i32>} : memref<2x1xf32, #tpu.memory_space<vmem>>, vector<2x1xf32>,
      %c0_28 = arith.constant 0 : index
      %c0_29 = arith.constant 0 : index
      %52 = vector.load %arg11[%c0_28, %c0_29] : memref<2x32xf32, #tpu.memory_space<vmem>>, vector<2x32xf32>
      %53 = vector.broadcast %42 : vector<2x1xf32> to vector<2x32xf32>
      %54 = arith.mulf %53, %52 : vector<2x32xf32>
      %55 = arith.truncf %45 : vector<2x128xf32> to vector<2x128xbf16>
      %cst_30 = arith.constant dense<0.000000e+00> : vector<2x32xf32>
      %56 = tpu.matmul %55, %27, %cst_30 {dimension_numbers = #tpu.dot_dimension_numbers<[1], [0], [0], [1], [0, 0, 1, 1], [], []>} : vector<2x128xbf16>, vector<128x32xbf16>, vector<2x32xf32> -> vector<2x32xf32>
      %57 = arith.addf %54, %56 : vector<2x32xf32>
      %c0_31 = arith.constant 0 : index
      %c0_32 = arith.constant 0 : index
      %58 = vector.load %arg11[%c0_31, %c0_32] : memref<2x32xf32, #tpu.memory_space<vmem>>, vector<2x32xf32>
      tpu.vector_store %arg11[%c0_31, %c0_32], %57 {strides = array<i32>} : memref<2x32xf32, #tpu.memory_space<vmem>>, vector<2x32xf32>,
      %c0_33 = arith.constant 0 : index
      %c0_34 = arith.constant 0 : index
      %59 = vector.load %arg9[%c0_33, %c0_34] : memref<2x1xf32, #tpu.memory_space<vmem>>, vector<2x1xf32>
      tpu.vector_store %arg9[%c0_33, %c0_34], %40 {strides = array<i32>} : memref<2x1xf32, #tpu.memory_space<vmem>>, vector<2x1xf32>,
    } else {
    }
    %c0_i32_2 = arith.constant 0 : i32
    %8 = arith.cmpi eq, %arg0, %c0_i32_2 : i32
    %9 = arith.extui %8 : i1 to i32
    %c0_i32_3 = arith.constant 0 : i32
    %10 = arith.cmpi ne, %9, %c0_i32_3 : i32
    scf.if %10 {
      %c0_4 = arith.constant 0 : index
      %c0_5 = arith.constant 0 : index
      %11 = vector.load %arg11[%c0_4, %c0_5] : memref<2x32xf32, #tpu.memory_space<vmem>>, vector<2x32xf32>
      %c0_6 = arith.constant 0 : index
      %c0_7 = arith.constant 0 : index
      %12 = vector.load %arg10[%c0_6, %c0_7] : memref<2x1xf32, #tpu.memory_space<vmem>>, vector<2x1xf32>
      %13 = vector.broadcast %12 : vector<2x1xf32> to vector<2x32xf32>
      %14 = arith.divf %11, %13 : vector<2x32xf32>
      %c0_8 = arith.constant 0 : index
      %c0_9 = arith.constant 0 : index
      %15 = vector.load %arg8[%c0_8, %c0_9] : memref<2x32xf32, #tpu.memory_space<vmem>>, vector<2x32xf32>
      tpu.vector_store %arg8[%c0_8, %c0_9], %14 {strides = array<i32>} : memref<2x32xf32, #tpu.memory_space<vmem>>, vector<2x32xf32>,
    } else {
    }
    return
  }
  func.func @transform_0(%arg0: i32, %arg1: memref<1xi32, #tpu.memory_space<smem>>) -> (i32, i32) {
    %c0_i32 = arith.constant 0 : i32
    %c0_i32_0 = arith.constant 0 : i32
    %c0_i32_1 = arith.constant 0 : i32
    return %c0_i32, %c0_i32_0 : i32, i32
  }
  func.func @transform_1(%arg0: i32, %arg1: memref<1xi32, #tpu.memory_space<smem>>) -> (i32, i32) {
    %c0_i32 = arith.constant 0 : i32
    %c0_i32_0 = arith.constant 0 : i32
    return %arg0, %c0_i32 : i32, i32
  }
  func.func @transform_2(%arg0: i32, %arg1: memref<1xi32, #tpu.memory_space<smem>>) -> (i32, i32) {
    %c0_i32 = arith.constant 0 : i32
    %c0_i32_0 = arith.constant 0 : i32
    %c0_i32_1 = arith.constant 0 : i32
    return %c0_i32, %c0_i32_0 : i32, i32
  }
  func.func @transform_3(%arg0: i32, %arg1: memref<1xi32, #tpu.memory_space<smem>>) -> (i32, i32) {
    %c0_i32 = arith.constant 0 : i32
    %c0_i32_0 = arith.constant 0 : i32
    %c0_i32_1 = arith.constant 0 : i32
    return %c0_i32, %c0_i32_0 : i32, i32
  }
  func.func @transform_4(%arg0: i32, %arg1: memref<1xi32, #tpu.memory_space<smem>>) -> (i32, i32) {
    %c0_i32 = arith.constant 0 : i32
    %c0_i32_0 = arith.constant 0 : i32
    %c0_i32_1 = arith.constant 0 : i32
    return %c0_i32, %c0_i32_0 : i32, i32
  }
  func.func @transform_5(%arg0: i32, %arg1: memref<1xi32, #tpu.memory_space<smem>>) -> (i32, i32) {
    %c0_i32 = arith.constant 0 : i32
    %c0_i32_0 = arith.constant 0 : i32
    %c0_i32_1 = arith.constant 0 : i32
    return %c0_i32, %c0_i32_0 : i32, i32
  }
  func.func @transform_6(%arg0: i32, %arg1: memref<1xi32, #tpu.memory_space<smem>>) -> (i32, i32) {
    %c0_i32 = arith.constant 0 : i32
    %c0_i32_0 = arith.constant 0 : i32
    %c0_i32_1 = arith.constant 0 : i32
    return %c0_i32, %c0_i32_0 : i32, i32
  }
}

</mosaic_0001>

<llo_original>
// kernel: attend_pallas.1
$region0: #{attend_pallas.1}
  #allocation0 [shape = 'u32[]', space=smem, size = 0x4, offset = 0x4, fixed_abs, tag = 'smem constant byte address 0x4 - core index']
  #allocation1 [shape = 'u32[144,128]{1,0:T(1,128)}', space=vmem, size = 0x12000, scoped, tag = 'internal scratch']
  #allocation2 [shape = 'f32[2,1]{1,0:T(2,128)}', space=vmem, size = 0x400, scoped, tag = 'scratch operand']
  #allocation3 [shape = 'f32[2,1]{1,0:T(2,128)}', space=vmem, size = 0x400, scoped, tag = 'scratch operand']
  #allocation4 [shape = 'f32[2,32]{1,0:T(2,128)}', space=vmem, size = 0x400, scoped, tag = 'scratch operand']
  #allocation5 [shape = 's32[1]{0}', space=sflag, size = 0x4, scoped, tag = 'scoped memory for attend_pallas.1']
  #allocation6 [shape = 's32[1]{0:T(128)S(6)}', space=smem, size = 0x200, scoped, tag = 'prefetched SMEM operand 0']
  %s0 = inlined_call_operand.<no memory space> [shape: s32[1], index: 0, kind: input, shape index: {}]
  %s1 = inlined_call_operand.vmem [shape: bf16[2,32], index: 1, kind: input, shape index: {}]
  %s2 = inlined_call_operand.vmem [shape: bf16[128,32], index: 2, kind: input, shape index: {}]
  %s3 = inlined_call_operand.vmem [shape: bf16[32,128], index: 3, kind: input, shape index: {}]
  %s4 = inlined_call_operand.vmem [shape: f32[1,128], index: 4, kind: input, shape index: {}]
  %s5 = inlined_call_operand.vmem [shape: bf16[32,160], index: 5, kind: input, shape index: {}]
  %s6 = inlined_call_operand.vmem [shape: f32[1,32], index: 6, kind: input, shape index: {}]
  %s7 = inlined_call_operand.hbm [shape: f32[2,32], index: 7, kind: output, shape index: {}]
  %s8 = sld [smem:[#allocation0]]
  $region46: #{attend_pallas.1} parent=0
    _
  %s10 = ssub.s32 1, %s8
  %s11 = scalar_select 0, %s10, %s8
  %12 = sst [smem:[#allocation6]] %s0
  $region1: #{attend_pallas.1} parent=0
    #allocation7 [shape = 'u8[1024]{0}', space=vmem, size = 0x400, scoped, tag = 'output window, operand 0, single buffered']
    #allocation8 [shape = 's32[1]{0}', space=sflag, size = 0x4, scoped, tag = 'scoped memory for attend_pallas.1']
    %13 = vsyncpa [#allocation8], 0
    // Predicated region
    $region2: #{attend_pallas.1} parent=1 // pred_check
      _
    $region3: #{attend_pallas.1} parent=1 // pred_check_branch
      %15 = sbr.rel (0) target = $region5
    $region4: #{attend_pallas.1} parent=1 // pred_region
      _
    $region5: #{attend_pallas.1} parent=1 // pred_fallthru
      _
    // Predicated region
    $region6: #{attend_pallas.1} parent=1 // pred_check
      _
    $region7: #{attend_pallas.1} parent=1 // pred_check_branch
      %17 = sbr.rel (0) target = $region9
    $region8: #{attend_pallas.1} parent=1 // pred_region
      _
    $region9: #{attend_pallas.1} parent=1 // pred_fallthru
      _
    // Predicated region
    $region10: #{attend_pallas.1} parent=1 // pred_check
      _
    $region11: #{attend_pallas.1} parent=1 // pred_check_branch
      %19 = sbr.rel (0) target = $region13
    $region12: #{attend_pallas.1} parent=1 // pred_region
      _
    $region13: #{attend_pallas.1} parent=1 // pred_fallthru
      _
    // Predicated region
    $region14: #{attend_pallas.1} parent=1 // pred_check
      _
    $region15: #{attend_pallas.1} parent=1 // pred_check_branch
      %21 = sbr.rel (0) target = $region17
    $region16: #{attend_pallas.1} parent=1 // pred_region
      _
    $region17: #{attend_pallas.1} parent=1 // pred_fallthru
      _
    // Predicated region
    $region18: #{attend_pallas.1} parent=1 // pred_check
      _
    $region19: #{attend_pallas.1} parent=1 // pred_check_branch
      %23 = sbr.rel (0) target = $region21
    $region20: #{attend_pallas.1} parent=1 // pred_region
      _
    $region21: #{attend_pallas.1} parent=1 // pred_fallthru
      _
    // Predicated region
    $region22: #{attend_pallas.1} parent=1 // pred_check
      _
    $region23: #{attend_pallas.1} parent=1 // pred_check_branch
      %25 = sbr.rel (0) target = $region25
    $region24: #{attend_pallas.1} parent=1 // pred_region
      _
    $region25: #{attend_pallas.1} parent=1 // pred_fallthru
      _
    %s27 = sld [smem:[#allocation6]]
    %p28 = scmp.eq.s32.totalorder 0, 0
    // Predicated region
    $region26: #{attend_pallas.1} parent=1 // pred_check
      %p29 = pneg %p28
    $region27: #{attend_pallas.1} parent=1 // pred_check_branch
      %31 = sbr.rel (%p29) target = $region29
    $region28: #{attend_pallas.1} parent=1 // pred_region
      %vm32 = vcmask 1024
      %33 = vst.msk [vmem:[#allocation2] sm:$0x3] %vm32, -inf
      %34 = vst.msk [vmem:[#allocation3] sm:$0x3] %vm32, 0.0
      %vm35 = vcmask 254976
      %36 = vst.msk [vmem:[#allocation4] sm:$0x3] %vm35, 0.0
    $region29: #{attend_pallas.1} parent=1 // pred_fallthru
      _
    %s37 = smul.u32 0, 128
    %p38 = scmp.lt.s32.totalorder %s37, %s27
    // Predicated region
    $region30: #{attend_pallas.1} parent=1 // pred_check
      %p39 = pneg %p38
    $region31: #{attend_pallas.1} parent=1 // pred_check_branch
      %41 = sbr.rel (%p39) target = $region33
    $region32: #{attend_pallas.1} parent=1 // pred_region
      %v42 = vld [vmem:[%s1] sm:$0x1]
      %v43 = vld [vmem:[%s2] sm:$0xf]
      %v44 = vld [vmem:[%s2 + $0x4] sm:$0xf]
      %v45 = vld [vmem:[%s2 + $0x8] sm:$0xf]
      %v46 = vld [vmem:[%s2 + $0xc] sm:$0xf]
      %v47 = vld [vmem:[%s2 + $0x10] sm:$0xf]
      %v48 = vld [vmem:[%s2 + $0x14] sm:$0xf]
      %v49 = vld [vmem:[%s2 + $0x18] sm:$0xf]
      %v50 = vld [vmem:[%s2 + $0x1c] sm:$0xf]
      %v51 = vld [vmem:[%s2 + $0x20] sm:$0xf]
      %v52 = vld [vmem:[%s2 + $0x24] sm:$0xf]
      %v53 = vld [vmem:[%s2 + $0x28] sm:$0xf]
      %v54 = vld [vmem:[%s2 + $0x2c] sm:$0xf]
      %v55 = vld [vmem:[%s2 + $0x30] sm:$0xf]
      %v56 = vld [vmem:[%s2 + $0x34] sm:$0xf]
      %v57 = vld [vmem:[%s2 + $0x38] sm:$0xf]
      %v58 = vld [vmem:[%s2 + $0x3c] sm:$0xf]
      %v59 = vld [vmem:[%s3] sm:$0xf]
      %v60 = vld [vmem:[%s3 + $0x4] sm:$0xf]
      %v61 = vld [vmem:[%s3 + $0x8] sm:$0xf]
      %v62 = vld [vmem:[%s3 + $0xc] sm:$0xf]
      %v63 = vld [vmem:[%s4] sm:$0x1]
      %v65 = vlaneseq
      %v66 = vshrl.u32 %v65, 7
      %v67 = vsub.s32 0, %v66
      %v68 = vrot.slane %v63, %v67
      %v74 = vunpack.c.l.b16 %v59
      %v75 = vunpack.c.l.b16 %v60
      %v76 = vunpack.c.l.b16 %v61
      %v77 = vunpack.c.l.b16 %v62
      %v78 = vpack.c.b16 %v75, %v74
      %v79 = vpack.c.b16 %v77, %v76
      %vm82 = vcmask 261120
      %v84 = vsel %vm82, %v42, 0
      %86 = vmatprep.subr.bf16.mxu0 0
      %87 = vmatpush1.bf16.msra.mxu0 %v78
      %88 = vmatprep.subr.bf16.mxu0 0
      %89 = vmatpush1.bf16.msra.mxu0 %v79
      %90 = vmatprep.subr.bf16.mxu0 0
      %91 = vmatpush1.bf16.msra.mxu0 0
      %92 = vmatprep.subr.bf16.mxu0 0
      %93 = vmatpush1.bf16.msra.mxu0 0
      %94 = vmatprep.subr.bf16.mxu0 0
      %95 = vmatpush1.bf16.msra.mxu0 0
      %96 = vmatprep.subr.bf16.mxu0 0
      %97 = vmatpush1.bf16.msra.mxu0 0
      %98 = vmatprep.subr.bf16.mxu0 0
      %99 = vmatpush1.bf16.msra.mxu0 0
      %100 = vmatprep.subr.bf16.mxu0 0
      %101 = vmatpush1.bf16.msra.mxu0 0
      %102 = vmatprep.subr.bf16.mxu0 0
      %103 = vmatpush1.bf16.msra.mxu0 0
      %104 = vmatprep.subr.bf16.mxu0 0
      %105 = vmatpush1.bf16.msra.mxu0 0
      %106 = vmatprep.subr.bf16.mxu0 0
      %107 = vmatpush1.bf16.msra.mxu0 0
      %108 = vmatprep.subr.bf16.mxu0 0
      %109 = vmatpush1.bf16.msra.mxu0 0
      %110 = vmatprep.subr.bf16.mxu0 0
      %111 = vmatpush1.bf16.msra.mxu0 0
      %112 = vmatprep.subr.bf16.mxu0 0
      %113 = vmatpush1.bf16.msra.mxu0 0
      %114 = vmatprep.subr.bf16.mxu0 0
      %115 = vmatpush1.bf16.msra.mxu0 0
      %116 = vmatprep.subr.bf16.mxu0 0
      %117 = vmatpush1.bf16.msra.mxu0 0
      %118 = vmatprep.mubr.bf16.mxu0 0
      %119 = vmatmul.mubr.bf16.gmra.mrb[0].mxu0 %v84
      %v120 = vpop.f32.mrb[0].mxu0
      %v121 = vadd.f32 %v68, %v120
      %v122 = vpop.f32.mrb[0].mxu0
      %v123 = vpop.f32.mrb[0].mxu0
      %v124 = vpop.f32.mrb[0].mxu0
      %125 = vdwg.mxu0
      %v126 = vpack.c.bf16 %v121, %v121
      %v127 = vld [vmem:[%s5] sm:$0xff]
      %v128 = vld [vmem:[%s5 + $0x8] sm:$0xff]
      %v129 = vld [vmem:[%s5 + $0x10] sm:$0xff]
      %v130 = vld [vmem:[%s5 + $0x18] sm:$0xff]
      %v147 = vunpack.c.l.b16 %v43
      %v148 = vunpack.c.l.b16 %v44
      %v149 = vunpack.c.l.b16 %v45
      %v150 = vunpack.c.l.b16 %v46
      %v151 = vunpack.c.l.b16 %v47
      %v152 = vunpack.c.l.b16 %v48
      %v153 = vunpack.c.l.b16 %v49
      %v154 = vunpack.c.l.b16 %v50
      %v155 = vunpack.c.l.b16 %v51
      %v156 = vunpack.c.l.b16 %v52
      %v157 = vunpack.c.l.b16 %v53
      %v158 = vunpack.c.l.b16 %v54
      %v159 = vunpack.c.l.b16 %v55
      %v160 = vunpack.c.l.b16 %v56
      %v161 = vunpack.c.l.b16 %v57
      %v162 = vunpack.c.l.b16 %v58
      %v163 = vpack.c.b16 %v148, %v147
      %v164 = vpack.c.b16 %v150, %v149
      %v165 = vpack.c.b16 %v152, %v151
      %v166 = vpack.c.b16 %v154, %v153
      %v167 = vpack.c.b16 %v156, %v155
      %v168 = vpack.c.b16 %v158, %v157
      %v169 = vpack.c.b16 %v160, %v159
      %v170 = vpack.c.b16 %v162, %v161
      %v175 = vunpack.c.l.b16 %v127
      %v176 = vunpack.c.h.b16 %v127
      %v177 = vunpack.c.l.b16 %v128
      %v178 = vunpack.c.h.b16 %v128
      %v179 = vunpack.c.l.b16 %v129
      %v180 = vunpack.c.h.b16 %v129
      %v181 = vunpack.c.l.b16 %v130
      %v182 = vunpack.c.h.b16 %v130
      %v183 = vpack.c.b16 %v177, %v175
      %v184 = vpack.c.b16 %v178, %v176
      %v185 = vpack.c.b16 %v181, %v179
      %v186 = vpack.c.b16 %v182, %v180
      %v192 = vsel %vm82, %v163, 0
      %v195 = vsel %vm82, %v164, 0
      %v198 = vsel %vm82, %v165, 0
      %v201 = vsel %vm82, %v166, 0
      %v204 = vsel %vm82, %v167, 0
      %v207 = vsel %vm82, %v168, 0
      %v210 = vsel %vm82, %v169, 0
      %v213 = vsel %vm82, %v170, 0
      %215 = vmatprep.subr.bf16.mxu0 %v184
      %216 = vmatpush1.bf16.msra.mxu0 %v183
      %217 = vmatprep.subr.bf16.mxu0 %v186
      %218 = vmatpush1.bf16.msra.mxu0 %v185
      %219 = vmatprep.subr.bf16.mxu0 0
      %220 = vmatpush1.bf16.msra.mxu0 0
      %221 = vmatprep.subr.bf16.mxu0 0
      %222 = vmatpush1.bf16.msra.mxu0 0
      %223 = vmatprep.subr.bf16.mxu0 0
      %224 = vmatpush1.bf16.msra.mxu0 0
      %225 = vmatprep.subr.bf16.mxu0 0
      %226 = vmatpush1.bf16.msra.mxu0 0
      %227 = vmatprep.subr.bf16.mxu0 0
      %228 = vmatpush1.bf16.msra.mxu0 0
      %229 = vmatprep.subr.bf16.mxu0 0
      %230 = vmatpush1.bf16.msra.mxu0 0
      %231 = vmatprep.subr.bf16.mxu0 0
      %232 = vmatpush1.bf16.msra.mxu0 0
      %233 = vmatprep.subr.bf16.mxu0 0
      %234 = vmatpush1.bf16.msra.mxu0 0
      %235 = vmatprep.subr.bf16.mxu0 0
      %236 = vmatpush1.bf16.msra.mxu0 0
      %237 = vmatprep.subr.bf16.mxu0 0
      %238 = vmatpush1.bf16.msra.mxu0 0
      %239 = vmatprep.subr.bf16.mxu0 0
      %240 = vmatpush1.bf16.msra.mxu0 0
      %241 = vmatprep.subr.bf16.mxu0 0
      %242 = vmatpush1.bf16.msra.mxu0 0
      %243 = vmatprep.subr.bf16.mxu0 0
      %244 = vmatpush1.bf16.msra.mxu0 0
      %245 = vmatprep.subr.bf16.mxu0 0
      %246 = vmatpush1.bf16.msra.mxu0 0
      %247 = vmatprep.mubr.bf16.mxu0 0
      %248 = vmatmul.mubr.bf16.gmra.mrb[0].mxu0 %v192
      %v249 = vpop.f32.mrb[0].mxu0
      %v250 = vadd.f32 0.0, %v249
      %v251 = vpop.f32.mrb[0].mxu0
      %v252 = vadd.f32 0.0, %v251
      %v253 = vpop.f32.mrb[0].mxu0
      %v254 = vadd.f32 0.0, %v253
      %v255 = vpop.f32.mrb[0].mxu0
      %v256 = vadd.f32 0.0, %v255
      %257 = vmatprep.mubr.bf16.mxu0 0
      %258 = vmatmul.mubr.bf16.gmra.mrb[0].mxu0 %v195
      %v259 = vpop.f32.mrb[0].mxu0
      %v260 = vadd.f32 0.0, %v259
      %v261 = vpop.f32.mrb[0].mxu0
      %v262 = vadd.f32 0.0, %v261
      %v263 = vpop.f32.mrb[0].mxu0
      %v264 = vadd.f32 0.0, %v263
      %v265 = vpop.f32.mrb[0].mxu0
      %v266 = vadd.f32 0.0, %v265
      %267 = vmatprep.mubr.bf16.mxu0 0
      %268 = vmatmul.mubr.bf16.gmra.mrb[0].mxu0 %v198
      %v269 = vpop.f32.mrb[0].mxu0
      %v270 = vadd.f32 0.0, %v269
      %v271 = vpop.f32.mrb[0].mxu0
      %v272 = vadd.f32 0.0, %v271
      %v273 = vpop.f32.mrb[0].mxu0
      %v274 = vadd.f32 0.0, %v273
      %v275 = vpop.f32.mrb[0].mxu0
      %v276 = vadd.f32 0.0, %v275
      %277 = vmatprep.mubr.bf16.mxu0 0
      %278 = vmatmul.mubr.bf16.gmra.mrb[0].mxu0 %v201
      %v279 = vpop.f32.mrb[0].mxu0
      %v280 = vadd.f32 0.0, %v279
      %v281 = vpop.f32.mrb[0].mxu0
      %v282 = vadd.f32 0.0, %v281
      %v283 = vpop.f32.mrb[0].mxu0
      %v284 = vadd.f32 0.0, %v283
      %v285 = vpop.f32.mrb[0].mxu0
      %v286 = vadd.f32 0.0, %v285
      %287 = vmatprep.mubr.bf16.mxu0 0
      %288 = vmatmul.mubr.bf16.gmra.mrb[0].mxu0 %v204
      %v289 = vpop.f32.mrb[0].mxu0
      %v290 = vadd.f32 0.0, %v289
      %v291 = vpop.f32.mrb[0].mxu0
      %v292 = vadd.f32 0.0, %v291
      %v293 = vpop.f32.mrb[0].mxu0
      %v294 = vadd.f32 0.0, %v293
      %v295 = vpop.f32.mrb[0].mxu0
      %v296 = vadd.f32 0.0, %v295
      %297 = vmatprep.mubr.bf16.mxu0 0
      %298 = vmatmul.mubr.bf16.gmra.mrb[0].mxu0 %v207
      %v299 = vpop.f32.mrb[0].mxu0
      %v300 = vadd.f32 0.0, %v299
      %v301 = vpop.f32.mrb[0].mxu0
      %v302 = vadd.f32 0.0, %v301
      %v303 = vpop.f32.mrb[0].mxu0
      %v304 = vadd.f32 0.0, %v303
      %v305 = vpop.f32.mrb[0].mxu0
      %v306 = vadd.f32 0.0, %v305
      %307 = vmatprep.mubr.bf16.mxu0 0
      %308 = vmatmul.mubr.bf16.gmra.mrb[0].mxu0 %v210
      %v309 = vpop.f32.mrb[0].mxu0
      %v310 = vadd.f32 0.0, %v309
      %v311 = vpop.f32.mrb[0].mxu0
      %v312 = vadd.f32 0.0, %v311
      %v313 = vpop.f32.mrb[0].mxu0
      %v314 = vadd.f32 0.0, %v313
      %v315 = vpop.f32.mrb[0].mxu0
      %v316 = vadd.f32 0.0, %v315
      %317 = vmatprep.mubr.bf16.mxu0 0
      %318 = vmatmul.mubr.bf16.gmra.mrb[0].mxu0 %v213
      %v319 = vpop.f32.mrb[0].mxu0
      %v320 = vadd.f32 0.0, %v319
      %v321 = vpop.f32.mrb[0].mxu0
      %v322 = vadd.f32 0.0, %v321
      %v323 = vpop.f32.mrb[0].mxu0
      %v324 = vadd.f32 0.0, %v323
      %v325 = vpop.f32.mrb[0].mxu0
      %v326 = vadd.f32 0.0, %v325
      %327 = vdwg.mxu0
      %v328 = vpack.c.bf16 %v254, %v250
      %v329 = vpack.c.bf16 %v264, %v260
      %v330 = vpack.c.bf16 %v274, %v270
      %v331 = vpack.c.bf16 %v284, %v280
      %v332 = vpack.c.bf16 %v294, %v290
      %v333 = vpack.c.bf16 %v304, %v300
      %v334 = vpack.c.bf16 %v314, %v310
      %v335 = vpack.c.bf16 %v324, %v320
      %v336 = vld [vmem:[%s6] sm:$0x1]
      %v338 = vlaneseq
      %v339 = vshrl.u32 %v338, 7
      %v340 = vsub.s32 0, %v339
      %v341 = vrot.slane %v336, %v340
      %v343 = vadd.f32 %v252, %v341
      %v344 = vadd.f32 %v256, %v341
      %v345 = vadd.f32 %v262, %v341
      %v346 = vadd.f32 %v266, %v341
      %v347 = vadd.f32 %v272, %v341
      %v348 = vadd.f32 %v276, %v341
      %v349 = vadd.f32 %v282, %v341
      %v350 = vadd.f32 %v286, %v341
      %v351 = vadd.f32 %v292, %v341
      %v352 = vadd.f32 %v296, %v341
      %v353 = vadd.f32 %v302, %v341
      %v354 = vadd.f32 %v306, %v341
      %v355 = vadd.f32 %v312, %v341
      %v356 = vadd.f32 %v316, %v341
      %v357 = vadd.f32 %v322, %v341
      %v358 = vadd.f32 %v326, %v341
      %v359 = vpack.c.bf16 %v344, %v343
      %v360 = vpack.c.bf16 %v346, %v345
      %v361 = vpack.c.bf16 %v348, %v347
      %v362 = vpack.c.bf16 %v350, %v349
      %v363 = vpack.c.bf16 %v352, %v351
      %v364 = vpack.c.bf16 %v354, %v353
      %v365 = vpack.c.bf16 %v356, %v355
      %v366 = vpack.c.bf16 %v358, %v357
      %367 = vmatprep.subr.bf16.mxu0 0
      %368 = vmatpush1.bf16.xpose.msra.mxu0 %v328
      %369 = vmatprep.subr.bf16.mxu0 0
      %370 = vmatpush1.bf16.xpose.msra.mxu0 %v329
      %371 = vmatprep.subr.bf16.mxu0 0
      %372 = vmatpush1.bf16.xpose.msra.mxu0 %v330
      %373 = vmatprep.subr.bf16.mxu0 0
      %374 = vmatpush1.bf16.xpose.msra.mxu0 %v331
      %375 = vmatprep.subr.bf16.mxu0 0
      %376 = vmatpush1.bf16.xpose.msra.mxu0 %v332
      %377 = vmatprep.subr.bf16.mxu0 0
      %378 = vmatpush1.bf16.xpose.msra.mxu0 %v333
      %379 = vmatprep.subr.bf16.mxu0 0
      %380 = vmatpush1.bf16.xpose.msra.mxu0 %v334
      %381 = vmatprep.subr.bf16.mxu0 0
      %382 = vmatpush1.bf16.xpose.msra.mxu0 %v335
      %383 = vmatprep.subr.bf16.mxu0 0
      %384 = vmatpush1.bf16.xpose.msra.mxu0 0
      %385 = vmatprep.subr.bf16.mxu0 0
      %386 = vmatpush1.bf16.xpose.msra.mxu0 0
      %387 = vmatprep.subr.bf16.mxu0 0
      %388 = vmatpush1.bf16.xpose.msra.mxu0 0
      %389 = vmatprep.subr.bf16.mxu0 0
      %390 = vmatpush1.bf16.xpose.msra.mxu0 0
      %391 = vmatprep.subr.bf16.mxu0 0
      %392 = vmatpush1.bf16.xpose.msra.mxu0 0
      %393 = vmatprep.subr.bf16.mxu0 0
      %394 = vmatpush1.bf16.xpose.msra.mxu0 0
      %395 = vmatprep.subr.bf16.mxu0 0
      %396 = vmatpush1.bf16.xpose.msra.mxu0 0
      %397 = vmatprep.subr.bf16.mxu0 0
      %398 = vmatpush1.bf16.xpose.msra.mxu0 0
      %399 = vmatprep.mubr.bf16.mxu0 0
      %400 = vmatmul.mubr.bf16.gmra.mrb[0].mxu0 %v126
      %v401 = vpop.f32.mrb[0].mxu0
      %v402 = vadd.f32 0.0, %v401
      %v403 = vpop.f32.mrb[0].mxu0
      %v404 = vpop.f32.mrb[0].mxu0
      %v405 = vpop.f32.mrb[0].mxu0
      %406 = vdwg.mxu0
      %v407 = vlaneseq
      %v408 = vand.u32 %v407, 127
      %v409 = vstv %s37
      %v410 = vadd.s32 %v409, %v408
      %v411 = vstv %s27
      %vm412 = vcmp.lt.s32.totalorder %v410, %v411
      %v413 = vsel %vm412, %v402, -1e+30
      %v414 = vld [vmem:[#allocation2] sm:$0x3]
      %vm415 = vcmask 1041408
      %v416 = vsel %vm415, %v413, -inf
      %417 = vmax.xlane.f32.xlu0 %v416
      %v418 = vpop.xlane.xlu0 %417
      %v419 = vmax.f32 %v414, %v418
      %v420 = vsub.f32 %v414, %v419
      %v421 = vmul.f32 %v420, 1.442695
      %v422 = vpow.pop %v421
      %424 = vset.pattern.permute.xlu0 0
      %425 = vperm.xlu0 %424, %v419
      %v426 = vpop.permute.xlu0 %425
      %v428 = vsub.f32 %v413, %v426
      %v429 = vmul.f32 %v428, 1.442695
      %v430 = vpow.pop %v429
      %v431 = vld [vmem:[#allocation3] sm:$0x3]
      %v432 = vmul.f32 %v422, %v431
      %v433 = vsel %vm415, %v430, 0.0
      %434 = vadd.xlane.f32.xlu0 %v433
      %v435 = vpop.xlane.xlu0 %434
      %v436 = vadd.f32 %v432, %v435
      %vm437 = vcmask 1024
      %438 = vst.msk [vmem:[#allocation3] sm:$0x3] %vm437, %v436
      %v439 = vld [vmem:[#allocation4] sm:$0x3]
      %441 = vset.pattern.permute.xlu0 0
      %442 = vperm.xlu0 %441, %v422
      %v443 = vpop.permute.xlu0 %442
      %v445 = vmul.f32 %v443, %v439
      %v446 = vpack.c.bf16 %v430, %v430
      %447 = vmatprep.subr.bf16.mxu0 0
      %448 = vmatpush1.bf16.msra.mxu0 %v359
      %449 = vmatprep.subr.bf16.mxu0 0
      %450 = vmatpush1.bf16.msra.mxu0 %v360
      %451 = vmatprep.subr.bf16.mxu0 0
      %452 = vmatpush1.bf16.msra.mxu0 %v361
      %453 = vmatprep.subr.bf16.mxu0 0
      %454 = vmatpush1.bf16.msra.mxu0 %v362
      %455 = vmatprep.subr.bf16.mxu0 0
      %456 = vmatpush1.bf16.msra.mxu0 %v363
      %457 = vmatprep.subr.bf16.mxu0 0
      %458 = vmatpush1.bf16.msra.mxu0 %v364
      %459 = vmatprep.subr.bf16.mxu0 0
      %460 = vmatpush1.bf16.msra.mxu0 %v365
      %461 = vmatprep.subr.bf16.mxu0 0
      %462 = vmatpush1.bf16.msra.mxu0 %v366
      %463 = vmatprep.subr.bf16.mxu0 0
      %464 = vmatpush1.bf16.msra.mxu0 0
      %465 = vmatprep.subr.bf16.mxu0 0
      %466 = vmatpush1.bf16.msra.mxu0 0
      %467 = vmatprep.subr.bf16.mxu0 0
      %468 = vmatpush1.bf16.msra.mxu0 0
      %469 = vmatprep.subr.bf16.mxu0 0
      %470 = vmatpush1.bf16.msra.mxu0 0
      %471 = vmatprep.subr.bf16.mxu0 0
      %472 = vmatpush1.bf16.msra.mxu0 0
      %473 = vmatprep.subr.bf16.mxu0 0
      %474 = vmatpush1.bf16.msra.mxu0 0
      %475 = vmatprep.subr.bf16.mxu0 0
      %476 = vmatpush1.bf16.msra.mxu0 0
      %477 = vmatprep.subr.bf16.mxu0 0
      %478 = vmatpush1.bf16.msra.mxu0 0
      %479 = vmatprep.mubr.bf16.mxu0 0
      %480 = vmatmul.mubr.bf16.gmra.mrb[0].mxu0 %v446
      %v481 = vpop.f32.mrb[0].mxu0
      %v482 = vadd.f32 0.0, %v481
      %v483 = vpop.f32.mrb[0].mxu0
      %v484 = vpop.f32.mrb[0].mxu0
      %v485 = vpop.f32.mrb[0].mxu0
      %486 = vdwg.mxu0
      %v487 = vadd.f32 %v445, %v482
      %vm488 = vcmask 254976
      %489 = vst.msk [vmem:[#allocation4] sm:$0x3] %vm488, %v487
      %490 = vst.msk [vmem:[#allocation2] sm:$0x3] %vm437, %v419
    $region33: #{attend_pallas.1} parent=1 // pred_fallthru
      _
    // Predicated region
    $region34: #{attend_pallas.1} parent=1 // pred_check
      %p491 = pneg %p28
    $region35: #{attend_pallas.1} parent=1 // pred_check_branch
      %493 = sbr.rel (%p491) target = $region37
    $region36: #{attend_pallas.1} parent=1 // pred_region
      %v494 = vld [vmem:[#allocation4] sm:$0x3]
      %v495 = vld [vmem:[#allocation3] sm:$0x3]
      %497 = vset.pattern.permute.xlu0 0
      %498 = vperm.xlu0 %497, %v495
      %v499 = vpop.permute.xlu0 %498
      %v501 = vrcp.pop %v499
      %v502 = vmul.f32 %v494, %v501
      %vm503 = vcmask 254976
      %504 = vst.msk [vmem:[#allocation7] sm:$0x3] %vm503, %v502
    $region37: #{attend_pallas.1} parent=1 // pred_fallthru
      _
    // Predicated region
    $region38: #{attend_pallas.1} parent=1 // pred_check
      _
    $region39: #{attend_pallas.1} parent=1 // pred_check_branch
      %506 = sbr.rel (0) target = $region41
    $region40: #{attend_pallas.1} parent=1 // pred_region
      %s508 = ssub.s32 32, 32
      %509 = vsyncadd [#allocation8], %s508
      %s511 = sshll.u32 [#allocation7], 4
      %s512 = int_to_ptr.vmem [resolvable:$true] %s511
      %514 = dma.vmem_to_hbm [thread:$0]  %s512, 32, %s7, [#allocation8]
    $region41: #{attend_pallas.1} parent=1 // pred_fallthru
      _
    // Predicated region
    $region42: #{attend_pallas.1} parent=1 // pred_check
      _
    $region43: #{attend_pallas.1} parent=1 // pred_check_branch
      %516 = sbr.rel (0) target = $region45
    $region44: #{attend_pallas.1} parent=1 // pred_region
      %517 = dma.done [#allocation8], 32
    $region45: #{attend_pallas.1} parent=1 // pred_fallthru
      _
    %518 = vsyncpa [#allocation8], 1

</llo_original>
